<compile_context>
chip_gen: v6e
topology: v6e:2x2x1
jax: 0.10.0
libtpu: 0.0.40
codegen_flags: <defaults>
</compile_context>

<pallas_src>
import jax
import jax.numpy as jnp
from jax.experimental import pallas as pl
from jax.experimental.pallas import tpu as pltpu


_LANE_CHOICES = (512, 256, 128)     # lane-dense last axis (multiples of 128)
_BLOCK_BYTES = 4 * 1024 * 1024      # ~4 MiB per block per array
_VMEM_LIMIT_BYTES = 32 * 1024 * 1024
_MIN_PALLAS_BYTES = 256 * 1024      # below this, dispatch overhead dominates


def _round_up(x: int, m: int) -> int:
    return ((x + m - 1) // m) * m


def _make_prob_mask_kernel(clamp_min: float, clamp_max: float):
    def prob_mask_kernel(w_ref, o_ref):
        # Elementwise hot path; compute cost is hidden under DMA.
        p = jax.nn.sigmoid(w_ref[...]).astype(o_ref.dtype)
        lo = jnp.asarray(clamp_min, dtype=o_ref.dtype)
        hi = jnp.asarray(clamp_max, dtype=o_ref.dtype)
        o_ref[...] = jnp.minimum(jnp.maximum(p, lo), hi)

    return prob_mask_kernel


def _pick_lanes(n: int):
    for lanes in _LANE_CHOICES:
        if n % lanes == 0:
            return lanes
    return None


def _prob_mask_pallas(mask_weight: jax.Array,
                      clamp_min: float = 1e-05,
                      clamp_max: float = 0.99999,
                      lanes: int | None = None) -> jax.Array:
    """Tiled, lane-dense, copy-free Pallas implementation of ProbMask.forward().

    Requires mask_weight.size % lanes == 0 (caller guarantees or we resolve it
    here); the (rows, lanes) view is then a free reshape on both sides.
    """
    orig_shape = mask_weight.shape
    dtype = mask_weight.dtype
    n = mask_weight.size

    if lanes is None:
        lanes = _pick_lanes(n)
    assert lanes is not None and n % lanes == 0, "lane-dense repack must be free"

    itemsize = jnp.dtype(dtype).itemsize
    sub = max(8, 32 // itemsize)                      # dtype-aware sublane multiple
    rows = n // lanes

    # Byte-budgeted block rows (kept constant in bytes across dtypes).
    budget_rows = max(sub, (_BLOCK_BYTES // (lanes * itemsize)) // sub * sub)

    if rows <= budget_rows:
        if rows >= 2 * sub:
            # Force >= 2 grid steps so both v7x TensorCores participate.
            block_rows = _round_up(pl.cdiv(rows, 2), sub)
        else:
            # Tiny: single full-extent block (allowed when block dim == array dim).
            block_rows = rows
    else:
        block_rows = budget_rows

    grid = (pl.cdiv(rows, block_rows),)               # partial last block is fine

    w2d = mask_weight.reshape(rows, lanes)            # zero-copy view
    kernel = _make_prob_mask_kernel(float(clamp_min), float(clamp_max))

    out2d = pl.pallas_call(
        kernel,
        out_shape=jax.ShapeDtypeStruct((rows, lanes), dtype),
        grid=grid,
        in_specs=[pl.BlockSpec((block_rows, lanes), lambda i: (i, 0))],
        out_specs=pl.BlockSpec((block_rows, lanes), lambda i: (i, 0)),
        compiler_params=pltpu.CompilerParams(
            dimension_semantics=("parallel",),
            vmem_limit_bytes=_VMEM_LIMIT_BYTES),
    )(w2d)

    return out2d.reshape(orig_shape)                  # zero-copy view back


def prob_mask_forward(mask_weight: jax.Array,
                      clamp_min: float = 1e-05,
                      clamp_max: float = 0.99999,
                      *,
                      min_pallas_bytes: int = _MIN_PALLAS_BYTES) -> jax.Array:
    """ProbMask.forward().

    Routes to Pallas only when the lane-dense repack is a free reshape AND the
    parameter is large enough to amortize dispatch; otherwise the XLA-fused
    sigmoid+clip (already one HBM read+write at roofline) is used.
    """
    n = mask_weight.size
    nbytes = n * jnp.dtype(mask_weight.dtype).itemsize
    lanes = _pick_lanes(n)
    if lanes is None or nbytes < min_pallas_bytes:
        p = jax.nn.sigmoid(mask_weight).astype(mask_weight.dtype)
        return jnp.clip(p, clamp_min, clamp_max)
    return _prob_mask_pallas(mask_weight, clamp_min, clamp_max, lanes=lanes)


def prob_mask_reference(mask_weight, clamp_min=1e-05, clamp_max=0.99999):
    return jnp.clip(jax.nn.sigmoid(mask_weight), clamp_min, clamp_max)


if __name__ == "__main__":
    # TODO(synk): parameter init/registration (torch.nn.Parameter(torch.randn))
    # is host-side module state, not a kernel; emulated with jax.random.normal.
    key = jax.random.PRNGKey(0)
    k0, k1 = jax.random.split(key)

    # Module-scale parameter, mirrors torch.randn(shape) in __init__.
    shape_small = (2, 4, 16, 16)
    w_small = jax.random.normal(k0, shape_small, dtype=jnp.float32)
    ref_small = prob_mask_reference(w_small)

    # 1) Public forward on the tiny module shape -> jnp fast path.
    out_small = jax.block_until_ready(prob_mask_forward(w_small))
    assert out_small.shape == shape_small and out_small.dtype == w_small.dtype
    assert bool(jnp.allclose(out_small, ref_small, atol=1e-6, rtol=1e-6))

    # 2) Pallas kernel exercised directly on the module shape
    #    (n = 2048 -> rows=4, lanes=512, single full-extent block, no padding).
    out_small_pl = jax.block_until_ready(_prob_mask_pallas(w_small))
    assert out_small_pl.shape == shape_small and out_small_pl.dtype == w_small.dtype
    assert bool(jnp.all(out_small_pl >= 1e-05)) and bool(jnp.all(out_small_pl <= 0.99999))
    assert bool(jnp.allclose(out_small_pl, ref_small, atol=1e-6, rtol=1e-6))

    # 3) A larger mask that crosses the size threshold -> tiled, pipelined
    #    Pallas path with >= 2 grid steps and a partial last block
    #    (n = 2 * 1043 * 16 * 32 = 1043 * 1024 elems -> rows=2086, lanes=512,
    #     block_rows=2048 -> grid=(2,), last block ragged).
    shape_big = (2, 1043, 16, 32)
    w_big = jax.random.normal(k1, shape_big, dtype=jnp.float32)
    out_big = jax.block_until_ready(prob_mask_forward(w_big))
    ref_big = prob_mask_reference(w_big)
    assert out_big.shape == shape_big and out_big.dtype == w_big.dtype
    assert bool(jnp.all(out_big >= 1e-05)) and bool(jnp.all(out_big <= 0.99999))
    assert bool(jnp.allclose(out_big, ref_big, atol=1e-6, rtol=1e-6))

    # 4) Misaligned size (n % 128 != 0) -> clean jnp fallback, no padding copies.
    w_odd = jax.random.normal(k1, (3, 5, 7, 11), dtype=jnp.float32)
    out_odd = jax.block_until_ready(prob_mask_forward(w_odd))
    assert bool(jnp.allclose(out_odd, prob_mask_reference(w_odd), atol=1e-6, rtol=1e-6))

    print("KERNEL_OK")
</pallas_src>

<mosaic_0001>
module attributes {stable_mosaic.version = 11 : i64} {
  func.func @prob_mask_kernel(%arg0: i32, %arg1: memref<4x512xf32, #tpu.memory_space<vmem>>, %arg2: memref<4x512xf32, #tpu.memory_space<vmem>>) attributes {dimension_semantics = [#tpu.dimension_semantics<parallel>], iteration_bounds = array<i64: 1>, scalar_prefetch = 0 : i64, scratch_operands = 0 : i64, tpu.core_type = #tpu.core_type<tc>, window_params = [{transform_indices = @transform_0, window_bounds = array<i64: 4, 512>}, {transform_indices = @transform_1, window_bounds = array<i64: 4, 512>}]} {
    %c0 = arith.constant 0 : index
    %c0_0 = arith.constant 0 : index
    %0 = vector.load %arg1[%c0, %c0_0] : memref<4x512xf32, #tpu.memory_space<vmem>>, vector<4x512xf32>
    %1 = arith.negf %0 : vector<4x512xf32>
    %2 = math.exp %1 : vector<4x512xf32>
    %cst = arith.constant 1.000000e+00 : f32
    %3 = vector.broadcast %cst : f32 to vector<4x512xf32>
    %4 = arith.addf %3, %2 : vector<4x512xf32>
    %5 = arith.divf %3, %4 : vector<4x512xf32>
    %cst_1 = arith.constant 9.99999974E-6 : f32
    %6 = vector.broadcast %cst_1 : f32 to vector<4x512xf32>
    %7 = arith.maximumf %5, %6 : vector<4x512xf32>
    %cst_2 = arith.constant 0.999989986 : f32
    %8 = vector.broadcast %cst_2 : f32 to vector<4x512xf32>
    %9 = arith.minimumf %7, %8 : vector<4x512xf32>
    %c0_3 = arith.constant 0 : index
    %c0_4 = arith.constant 0 : index
    %10 = vector.load %arg2[%c0_3, %c0_4] : memref<4x512xf32, #tpu.memory_space<vmem>>, vector<4x512xf32>
    tpu.vector_store %arg2[%c0_3, %c0_4], %9 {strides = array<i32>} : memref<4x512xf32, #tpu.memory_space<vmem>>, vector<4x512xf32>,
    return
  }
  func.func @transform_0(%arg0: i32) -> (i32, i32) {
    %c0_i32 = arith.constant 0 : i32
    %c0_i32_0 = arith.constant 0 : i32
    return %arg0, %c0_i32 : i32, i32
  }
  func.func @transform_1(%arg0: i32) -> (i32, i32) {
    %c0_i32 = arith.constant 0 : i32
    %c0_i32_0 = arith.constant 0 : i32
    return %arg0, %c0_i32 : i32, i32
  }
}

</mosaic_0001>

<llo_original>
// kernel: tpu_custom_call.1
$region0: #{tpu_custom_call.1}
  #allocation0 [shape = 'u32[]', space=smem, size = 0x4, offset = 0x4, fixed_abs, tag = 'smem constant byte address 0x4 - core index']
  #allocation1 [shape = 'u32[144,128]{1,0:T(1,128)}', space=vmem, size = 0x12000, scoped, tag = 'internal scratch']
  %s0 = inlined_call_operand.hbm [shape: f32[4,512], index: 0, kind: input, shape index: {}]
  %s1 = inlined_call_operand.hbm [shape: f32[4,512], index: 1, kind: output, shape index: {}]
  %s2 = sld [smem:[#allocation0]]
  $region18: #{tpu_custom_call.1} parent=0
    _
  %s4 = ssub.s32 1, %s2
  %s5 = scalar_select 0, %s4, %s2
  $region1: #{tpu_custom_call.1} parent=0
    #allocation2 [shape = 'u8[8192]{0}', space=vmem, size = 0x2000, scoped, tag = 'input window, operand 0, single buffered']
    #allocation3 [shape = 's32[1]{0}', space=sflag, size = 0x4, scoped, tag = 'scoped memory for tpu_custom_call.1']
    #allocation4 [shape = 's32[1]{0}', space=sflag, size = 0x4, scoped, tag = 'scoped memory for tpu_custom_call.1']
    #allocation5 [shape = 'u8[8192]{0}', space=vmem, size = 0x2000, scoped, tag = 'output window, operand 0, single buffered']
    %6 = vsyncpa [#allocation3], 0
    %7 = vsyncpa [#allocation4], 0
    // Predicated region
    $region2: #{tpu_custom_call.1} parent=1 // pred_check
      _
    $region3: #{tpu_custom_call.1} parent=1 // pred_check_branch
      %9 = sbr.rel (0) target = $region5
    $region4: #{tpu_custom_call.1} parent=1 // pred_region
      %s11 = ssub.s32 256, 256
      %12 = vsyncadd [#allocation3], %s11
      %s14 = sshll.u32 [#allocation2], 4
      %s15 = int_to_ptr.vmem [resolvable:$true] %s14
      %17 = dma.hbm_to_vmem [thread:$0]  %s0, 256, %s15, [#allocation3]
    $region5: #{tpu_custom_call.1} parent=1 // pred_fallthru
      _
    // Predicated region
    $region6: #{tpu_custom_call.1} parent=1 // pred_check
      _
    $region7: #{tpu_custom_call.1} parent=1 // pred_check_branch
      %19 = sbr.rel (0) target = $region9
    $region8: #{tpu_custom_call.1} parent=1 // pred_region
      %20 = dma.done [#allocation3], 256
    $region9: #{tpu_custom_call.1} parent=1 // pred_fallthru
      _
    %v21 = vld [vmem:[#allocation2] sm:$0xff]
    %v22 = vld [vmem:[#allocation2 + $0x8] sm:$0xff]
    %v23 = vxor.u32 %v21, 2147483648
    %v24 = vxor.u32 %v22, 2147483648
    %v25 = vmul.f32 %v23, 1.442695
    %v26 = vpow.pop %v25
    %v27 = vmul.f32 %v24, 1.442695
    %v28 = vpow.pop %v27
    %v29 = vadd.f32 %v26, 1.0
    %v30 = vadd.f32 %v28, 1.0
    %v31 = vrcp.pop %v29
    %v32 = vmul.f32 1.0, %v31
    %v33 = vrcp.pop %v30
    %v34 = vmul.f32 1.0, %v33
    %v35 = vmax.f32 %v32, 1e-05
    %v36 = vmax.f32 %v34, 1e-05
    %v37 = vmin.f32 %v35, 0.99999
    %v38 = vmin.f32 %v36, 0.99999
    %39 = vst [vmem:[#allocation5] sm:$0xff] %v37
    %40 = vst [vmem:[#allocation5 + $0x8] sm:$0xff] %v38
    // Predicated region
    $region10: #{tpu_custom_call.1} parent=1 // pred_check
      _
    $region11: #{tpu_custom_call.1} parent=1 // pred_check_branch
      %42 = sbr.rel (0) target = $region13
    $region12: #{tpu_custom_call.1} parent=1 // pred_region
      %s44 = ssub.s32 256, 256
      %45 = vsyncadd [#allocation4], %s44
      %s47 = sshll.u32 [#allocation5], 4
      %s48 = int_to_ptr.vmem [resolvable:$true] %s47
      %50 = dma.vmem_to_hbm [thread:$0]  %s48, 256, %s1, [#allocation4]
    $region13: #{tpu_custom_call.1} parent=1 // pred_fallthru
      _
    // Predicated region
    $region14: #{tpu_custom_call.1} parent=1 // pred_check
      _
    $region15: #{tpu_custom_call.1} parent=1 // pred_check_branch
      %52 = sbr.rel (0) target = $region17
    $region16: #{tpu_custom_call.1} parent=1 // pred_region
      %53 = dma.done [#allocation4], 256
    $region17: #{tpu_custom_call.1} parent=1 // pred_fallthru
      _
    %54 = vsyncpa [#allocation3], 1
    %55 = vsyncpa [#allocation4], 1

</llo_original>
